<compile_context>
chip_gen: v7x
topology: tpu7x:2x2x1
jax: 0.10.0
libtpu: 0.0.40
codegen_flags: <defaults>
</compile_context>

<pallas_src>
import functools

import jax
import jax.numpy as jnp
from jax.experimental import pallas as pl
from jax.experimental.pallas import tpu as pltpu

LANES = 128
TILE_R_MAX = 2048  # rows per grid step: 2048*128*4B = 1 MiB per f32 input block


def _dice_kernel(smooth, valid_rows, tile_r, need_mask,
                 x_ref, t_ref, o_ref, acc_prod_ref, acc_sum_ref):
    """Streamed reduction over (tile_r, 128) blocks.

    acc_prod_ref (VMEM, (8,128) f32): lane-parallel running sum of x*t
    acc_sum_ref  (VMEM, (8,128) f32): lane-parallel running sum of x+t
    o_ref        (SMEM, (1,1)  f32): scalar dice loss (written on last step)
    """
    i = pl.program_id(0)

    @pl.when(i == 0)
    def _init():
        acc_prod_ref[...] = jnp.zeros_like(acc_prod_ref)
        acc_sum_ref[...] = jnp.zeros_like(acc_sum_ref)

    x = x_ref[...].astype(jnp.float32)
    t = t_ref[...].astype(jnp.float32)
    prod = x * t
    ssum = x + t

    if need_mask:
        # Mask rows of the final (partial) block that lie past the real data.
        row_in_block = jax.lax.broadcasted_iota(jnp.int32, (tile_r, LANES), 0)
        global_row = i * tile_r + row_in_block
        mask = global_row < valid_rows
        prod = jnp.where(mask, prod, 0.0)
        ssum = jnp.where(mask, ssum, 0.0)

    # Reduce only over the leading (vreg-group) axis -> pure VPU adds; the
    # expensive cross-lane/sublane reduce is deferred to the finalize step.
    acc_prod_ref[...] += prod.reshape(tile_r // 8, 8, LANES).sum(axis=0)
    acc_sum_ref[...] += ssum.reshape(tile_r // 8, 8, LANES).sum(axis=0)

    @pl.when(i == pl.num_programs(0) - 1)
    def _finalize():
        inter = jnp.sum(acc_prod_ref[...])
        denom = jnp.sum(acc_sum_ref[...])
        dice = (2.0 * inter + smooth) / (denom + smooth)
        o_ref[0, 0] = 1.0 - dice


def dice_loss(inputs, targets, smooth: float = 1.0):
    """Pallas implementation of DiceLoss.forward.

    inputs, targets: arrays of identical total size (any shape, e.g. NCHW).
    Returns a scalar float32 loss.
    """
    x = jnp.ravel(inputs)
    t = jnp.ravel(targets)
    n = x.shape[0]
    assert t.shape[0] == n, "inputs and targets must have the same size"

    # Only pad when the flat length is not a multiple of 8*128 (rare for
    # segmentation shapes); zero padding is neutral for all sums.
    unit = 8 * LANES
    n_pad = pl.cdiv(n, unit) * unit
    if n_pad != n:
        x = jnp.pad(x, (0, n_pad - n))
        t = jnp.pad(t, (0, n_pad - n))

    rows = n_pad // LANES
    x2d = x.reshape(rows, LANES)
    t2d = t.reshape(rows, LANES)

    tile_r = min(TILE_R_MAX, rows)       # always a multiple of 8
    grid = (pl.cdiv(rows, tile_r),)
    need_mask = (rows % tile_r) != 0     # static: only the tail block is partial

    kernel = functools.partial(
        _dice_kernel, float(smooth), int(rows), int(tile_r), bool(need_mask)
    )

    out = pl.pallas_call(
        kernel,
        out_shape=jax.ShapeDtypeStruct((1, 1), jnp.float32),
        grid_spec=pltpu.PrefetchScalarGridSpec(
            num_scalar_prefetch=0,
            grid=grid,
            in_specs=[
                pl.BlockSpec((tile_r, LANES), lambda i: (i, 0)),
                pl.BlockSpec((tile_r, LANES), lambda i: (i, 0)),
            ],
            out_specs=pl.BlockSpec(
                (1, 1), lambda i: (0, 0), memory_space=pltpu.SMEM
            ),
            scratch_shapes=[
                pltpu.VMEM((8, LANES), jnp.float32),  # running sum(x*t)
                pltpu.VMEM((8, LANES), jnp.float32),  # running sum(x+t)
            ],
        ),
        compiler_params=pltpu.CompilerParams(
            dimension_semantics=("arbitrary",),
        ),
        # TODO(synk): on v7x, split the scan across the 2 TensorCores with a
        # leading "parallel" grid axis and combine per-core partials in JAX.
    )(x2d, t2d)

    return out[0, 0]


def _dice_loss_ref(inputs, targets, smooth: float = 1.0):
    x = jnp.ravel(inputs).astype(jnp.float32)
    t = jnp.ravel(targets).astype(jnp.float32)
    inter = jnp.sum(x * t)
    dice = (2.0 * inter + smooth) / (jnp.sum(x) + jnp.sum(t) + smooth)
    return 1.0 - dice


if __name__ == "__main__":
    key = jax.random.PRNGKey(0)
    k1, k2 = jax.random.split(key)

    # Small shapes consistent with a segmentation head output (NCHW).
    inputs = jax.random.uniform(k1, (2, 4, 16, 16), dtype=jnp.float32)
    targets = (jax.random.uniform(k2, (2, 4, 16, 16)) > 0.5).astype(jnp.float32)

    loss = dice_loss(inputs, targets, smooth=1.0)
    loss = jax.block_until_ready(loss)

    ref = _dice_loss_ref(inputs, targets, smooth=1.0)
    assert jnp.allclose(loss, ref, rtol=1e-5, atol=1e-5), (loss, ref)

    print("KERNEL_OK")
</pallas_src>

<mosaic_0001>
module attributes {stable_mosaic.version = 11 : i64} {
  func.func @_dice_kernel(%arg0: i32, %arg1: memref<16x128xf32, #tpu.memory_space<vmem>>, %arg2: memref<16x128xf32, #tpu.memory_space<vmem>>, %arg3: memref<1x1xf32, #tpu.memory_space<smem>>, %arg4: memref<8x128xf32, #tpu.memory_space<vmem>>, %arg5: memref<8x128xf32, #tpu.memory_space<vmem>>) attributes {dimension_semantics = [#tpu.dimension_semantics<arbitrary>], iteration_bounds = array<i64: 1>, scalar_prefetch = 0 : i64, scratch_operands = 2 : i64, tpu.core_type = #tpu.core_type<tc>, window_params = [{transform_indices = @transform_0, window_bounds = array<i64: 16, 128>}, {transform_indices = @transform_1, window_bounds = array<i64: 16, 128>}, {transform_indices = @transform_2, window_bounds = array<i64: 1, 1>}]} {
    %c0_i32 = arith.constant 0 : i32
    %0 = arith.cmpi eq, %arg0, %c0_i32 : i32
    %1 = arith.extui %0 : i1 to i32
    %c0_i32_0 = arith.constant 0 : i32
    %2 = arith.cmpi ne, %1, %c0_i32_0 : i32
    scf.if %2 {
      %cst_15 = arith.constant 0.000000e+00 : f32
      %20 = vector.broadcast %cst_15 : f32 to vector<8x128xf32>
      %c0_16 = arith.constant 0 : index
      %c0_17 = arith.constant 0 : index
      %21 = vector.load %arg4[%c0_16, %c0_17] : memref<8x128xf32, #tpu.memory_space<vmem>>, vector<8x128xf32>
      tpu.vector_store %arg4[%c0_16, %c0_17], %20 {strides = array<i32>} : memref<8x128xf32, #tpu.memory_space<vmem>>, vector<8x128xf32>,
      %cst_18 = arith.constant 0.000000e+00 : f32
      %22 = vector.broadcast %cst_18 : f32 to vector<8x128xf32>
      %c0_19 = arith.constant 0 : index
      %c0_20 = arith.constant 0 : index
      %23 = vector.load %arg5[%c0_19, %c0_20] : memref<8x128xf32, #tpu.memory_space<vmem>>, vector<8x128xf32>
      tpu.vector_store %arg5[%c0_19, %c0_20], %22 {strides = array<i32>} : memref<8x128xf32, #tpu.memory_space<vmem>>, vector<8x128xf32>,
    } else {
    }
    %c0 = arith.constant 0 : index
    %c0_1 = arith.constant 0 : index
    %3 = vector.load %arg1[%c0, %c0_1] : memref<16x128xf32, #tpu.memory_space<vmem>>, vector<16x128xf32>
    %c0_2 = arith.constant 0 : index
    %c0_3 = arith.constant 0 : index
    %4 = vector.load %arg2[%c0_2, %c0_3] : memref<16x128xf32, #tpu.memory_space<vmem>>, vector<16x128xf32>
    %5 = arith.mulf %3, %4 : vector<16x128xf32>
    %6 = arith.addf %3, %4 : vector<16x128xf32>
    %c0_4 = arith.constant 0 : index
    %c0_5 = arith.constant 0 : index
    %7 = vector.load %arg4[%c0_4, %c0_5] : memref<8x128xf32, #tpu.memory_space<vmem>>, vector<8x128xf32>
    %8 = vector.shape_cast %5 : vector<16x128xf32> to vector<2x8x128xf32>
    %cst = arith.constant dense<0.000000e+00> : vector<8x128xf32>
    %9 = vector.multi_reduction <add>, %8, %cst [0] : vector<2x8x128xf32> to vector<8x128xf32>
    %10 = arith.addf %7, %9 : vector<8x128xf32>
    %c0_6 = arith.constant 0 : index
    %c0_7 = arith.constant 0 : index
    %11 = vector.load %arg4[%c0_6, %c0_7] : memref<8x128xf32, #tpu.memory_space<vmem>>, vector<8x128xf32>
    tpu.vector_store %arg4[%c0_6, %c0_7], %10 {strides = array<i32>} : memref<8x128xf32, #tpu.memory_space<vmem>>, vector<8x128xf32>,
    %c0_8 = arith.constant 0 : index
    %c0_9 = arith.constant 0 : index
    %12 = vector.load %arg5[%c0_8, %c0_9] : memref<8x128xf32, #tpu.memory_space<vmem>>, vector<8x128xf32>
    %13 = vector.shape_cast %6 : vector<16x128xf32> to vector<2x8x128xf32>
    %cst_10 = arith.constant dense<0.000000e+00> : vector<8x128xf32>
    %14 = vector.multi_reduction <add>, %13, %cst_10 [0] : vector<2x8x128xf32> to vector<8x128xf32>
    %15 = arith.addf %12, %14 : vector<8x128xf32>
    %c0_11 = arith.constant 0 : index
    %c0_12 = arith.constant 0 : index
    %16 = vector.load %arg5[%c0_11, %c0_12] : memref<8x128xf32, #tpu.memory_space<vmem>>, vector<8x128xf32>
    tpu.vector_store %arg5[%c0_11, %c0_12], %15 {strides = array<i32>} : memref<8x128xf32, #tpu.memory_space<vmem>>, vector<8x128xf32>,
    %c0_i32_13 = arith.constant 0 : i32
    %17 = arith.cmpi eq, %arg0, %c0_i32_13 : i32
    %18 = arith.extui %17 : i1 to i32
    %c0_i32_14 = arith.constant 0 : i32
    %19 = arith.cmpi ne, %18, %c0_i32_14 : i32
    scf.if %19 {
      %c0_15 = arith.constant 0 : index
      %c0_16 = arith.constant 0 : index
      %20 = vector.load %arg4[%c0_15, %c0_16] : memref<8x128xf32, #tpu.memory_space<vmem>>, vector<8x128xf32>
      %21 = vector.shape_cast %20 : vector<8x128xf32> to vector<1x8x128xf32>
      %cst_17 = arith.constant dense<0.000000e+00> : vector<1xf32>
      %22 = vector.multi_reduction <add>, %21, %cst_17 [1, 2] : vector<1x8x128xf32> to vector<1xf32>
      %23 = vector.shape_cast %22 : vector<1xf32> to vector<1x1x1xf32>
      %24 = vector.extract %23[0, 0, 0] : f32 from vector<1x1x1xf32>
      %c0_18 = arith.constant 0 : index
      %c0_19 = arith.constant 0 : index
      %25 = vector.load %arg5[%c0_18, %c0_19] : memref<8x128xf32, #tpu.memory_space<vmem>>, vector<8x128xf32>
      %26 = vector.shape_cast %25 : vector<8x128xf32> to vector<1x8x128xf32>
      %cst_20 = arith.constant dense<0.000000e+00> : vector<1xf32>
      %27 = vector.multi_reduction <add>, %26, %cst_20 [1, 2] : vector<1x8x128xf32> to vector<1xf32>
      %28 = vector.shape_cast %27 : vector<1xf32> to vector<1x1x1xf32>
      %29 = vector.extract %28[0, 0, 0] : f32 from vector<1x1x1xf32>
      %cst_21 = arith.constant 2.000000e+00 : f32
      %30 = arith.mulf %cst_21, %24 : f32
      %cst_22 = arith.constant 1.000000e+00 : f32
      %31 = arith.addf %30, %cst_22 : f32
      %cst_23 = arith.constant 1.000000e+00 : f32
      %32 = arith.addf %29, %cst_23 : f32
      %33 = arith.divf %31, %32 : f32
      %cst_24 = arith.constant 1.000000e+00 : f32
      %34 = arith.subf %cst_24, %33 : f32
      %c0_25 = arith.constant 0 : index
      %c0_26 = arith.constant 0 : index
      %35 = memref.load %arg3[%c0_25, %c0_26] : memref<1x1xf32, #tpu.memory_space<smem>>
      memref.store %34, %arg3[%c0_25, %c0_26] : memref<1x1xf32, #tpu.memory_space<smem>>
    } else {
    }
    return
  }
  func.func @transform_0(%arg0: i32) -> (i32, i32) {
    %c0_i32 = arith.constant 0 : i32
    %c0_i32_0 = arith.constant 0 : i32
    return %arg0, %c0_i32 : i32, i32
  }
  func.func @transform_1(%arg0: i32) -> (i32, i32) {
    %c0_i32 = arith.constant 0 : i32
    %c0_i32_0 = arith.constant 0 : i32
    return %arg0, %c0_i32 : i32, i32
  }
  func.func @transform_2(%arg0: i32) -> (i32, i32) {
    %c0_i32 = arith.constant 0 : i32
    %c0_i32_0 = arith.constant 0 : i32
    %c0_i32_1 = arith.constant 0 : i32
    return %c0_i32, %c0_i32_0 : i32, i32
  }
}

</mosaic_0001>

<llo_original>
// kernel: tpu_custom_call.1
$region0: #{tpu_custom_call.1}
  #allocation0 [shape = 'u32[]', space=smem, size = 0x4, offset = 0x4, fixed_abs, tag = 'smem constant byte address 0x4 - core index']
  #allocation1 [shape = 'u32[144,128]{1,0:T(1,128)}', space=vmem, size = 0x12000, scoped, tag = 'internal scratch']
  #allocation2 [shape = 'f32[8,128]{1,0:T(8,128)}', space=vmem, size = 0x1000, scoped, tag = 'scratch operand']
  #allocation3 [shape = 'f32[8,128]{1,0:T(8,128)}', space=vmem, size = 0x1000, scoped, tag = 'scratch operand']
  %s0 = inlined_call_operand.hbm [shape: f32[16,128], index: 0, kind: input, shape index: {}]
  %s1 = inlined_call_operand.hbm [shape: f32[16,128], index: 1, kind: input, shape index: {}]
  %s2 = inlined_call_operand.hbm [shape: f32[1,1], index: 2, kind: output, shape index: {}]
  %s3 = sld [smem:[#allocation0]]
  $region34: #{tpu_custom_call.1} parent=0
    _
  %s5 = ssub.s32 1, %s3
  %s6 = scalar_select 0, %s5, %s3
  $region1: #{tpu_custom_call.1} parent=0
    #allocation4 [shape = 'u8[8192]{0}', space=vmem, size = 0x2000, scoped, tag = 'input window, operand 0, single buffered']
    #allocation5 [shape = 's32[1]{0}', space=sflag, size = 0x4, scoped, tag = 'scoped memory for tpu_custom_call.1']
    #allocation6 [shape = 's32[1]{0}', space=sflag, size = 0x4, scoped, tag = 'scoped memory for tpu_custom_call.1']
    #allocation7 [shape = 'u8[8192]{0}', space=vmem, size = 0x2000, scoped, tag = 'input window, operand 1, single buffered']
    #allocation8 [shape = 's32[1]{0}', space=sflag, size = 0x4, scoped, tag = 'scoped memory for tpu_custom_call.1']
    #allocation9 [shape = 'u8[512]{0}', space=smem, size = 0x200, scoped, tag = 'output window, operand 0, single buffered']
    %7 = vsyncpa [#allocation5], 0
    %8 = vsyncpa [#allocation8], 0
    %9 = vsyncpa [#allocation6], 0
    // Predicated region
    $region2: #{tpu_custom_call.1} parent=1 // pred_check
      _
    $region3: #{tpu_custom_call.1} parent=1 // pred_check_branch
      %11 = sbr.rel (0) target = $region5
    $region4: #{tpu_custom_call.1} parent=1 // pred_region
      %s13 = ssub.s32 256, 256
      %14 = vsyncadd [#allocation5], %s13
      %s15 = sshll.u32 [#allocation4], 4
      %s16 = int_to_ptr.vmem [resolvable:$true] %s15
      %21 = dma.hbm_to_vmem [thread:$0]  %s0, 256, %s16, [#allocation5], 128, 128, 8
    $region5: #{tpu_custom_call.1} parent=1 // pred_fallthru
      _
    // Predicated region
    $region6: #{tpu_custom_call.1} parent=1 // pred_check
      _
    $region7: #{tpu_custom_call.1} parent=1 // pred_check_branch
      %23 = sbr.rel (0) target = $region9
    $region8: #{tpu_custom_call.1} parent=1 // pred_region
      %s25 = ssub.s32 256, 256
      %26 = vsyncadd [#allocation8], %s25
      %s27 = sshll.u32 [#allocation7], 4
      %s28 = int_to_ptr.vmem [resolvable:$true] %s27
      %33 = dma.hbm_to_vmem [thread:$0]  %s1, 256, %s28, [#allocation8], 128, 128, 8
    $region9: #{tpu_custom_call.1} parent=1 // pred_fallthru
      _
    // Predicated region
    $region10: #{tpu_custom_call.1} parent=1 // pred_check
      _
    $region11: #{tpu_custom_call.1} parent=1 // pred_check_branch
      %35 = sbr.rel (0) target = $region13
    $region12: #{tpu_custom_call.1} parent=1 // pred_region
      %36 = dma.done [#allocation5], 256
    $region13: #{tpu_custom_call.1} parent=1 // pred_fallthru
      _
    // Predicated region
    $region14: #{tpu_custom_call.1} parent=1 // pred_check
      _
    $region15: #{tpu_custom_call.1} parent=1 // pred_check_branch
      %38 = sbr.rel (0) target = $region17
    $region16: #{tpu_custom_call.1} parent=1 // pred_region
      %39 = dma.done [#allocation8], 256
    $region17: #{tpu_custom_call.1} parent=1 // pred_fallthru
      _
    %p40 = scmp.eq.s32.totalorder 0, 0
    // Predicated region
    $region18: #{tpu_custom_call.1} parent=1 // pred_check
      %p41 = pneg %p40
    $region19: #{tpu_custom_call.1} parent=1 // pred_check_branch
      %43 = sbr.rel (%p41) target = $region21
    $region20: #{tpu_custom_call.1} parent=1 // pred_region
      %44 = vst [vmem:[#allocation2] sm:$0xff] 0.0
      %45 = vst [vmem:[#allocation3] sm:$0xff] 0.0
    $region21: #{tpu_custom_call.1} parent=1 // pred_fallthru
      _
    %v46 = vld [vmem:[#allocation4] sm:$0xff]
    %v47 = vld [vmem:[#allocation4 + $0x8] sm:$0xff]
    %v48 = vld [vmem:[#allocation7] sm:$0xff]
    %v49 = vld [vmem:[#allocation7 + $0x8] sm:$0xff]
    %v50 = vmul.f32 %v46, %v48
    %v51 = vmul.f32 %v47, %v49
    %v52 = vadd.f32 %v46, %v48
    %v53 = vadd.f32 %v47, %v49
    %v54 = vld [vmem:[#allocation2] sm:$0xff]
    %v55 = vadd.f32 %v50, %v51
    %v56 = vadd.f32 %v54, %v55
    %57 = vst [vmem:[#allocation2] sm:$0xff] %v56
    %v58 = vld [vmem:[#allocation3] sm:$0xff]
    %v59 = vadd.f32 %v52, %v53
    %v60 = vadd.f32 %v58, %v59
    %61 = vst [vmem:[#allocation3] sm:$0xff] %v60
    // Predicated region
    $region22: #{tpu_custom_call.1} parent=1 // pred_check
      %p62 = pneg %p40
    $region23: #{tpu_custom_call.1} parent=1 // pred_check_branch
      %64 = sbr.rel (%p62) target = $region25
    $region24: #{tpu_custom_call.1} parent=1 // pred_region
      %v65 = vld [vmem:[#allocation2] sm:$0xff]
      %66 = vadd.xlane.f32.xlu0 %v65
      %v67 = vpop.xlane.xlu0 %66
      %v68 = vrot.slane %v67, 4
      %v69 = vadd.f32 %v67, %v68
      %v70 = vrot.slane %v69, 2
      %v71 = vadd.f32 %v69, %v70
      %v72 = vrot.slane %v71, 1
      %v73 = vadd.f32 %v71, %v72
      %s74 = vtos %v73
      %v75 = vld [vmem:[#allocation3] sm:$0xff]
      %76 = vadd.xlane.f32.xlu0 %v75
      %v77 = vpop.xlane.xlu0 %76
      %v78 = vrot.slane %v77, 4
      %v79 = vadd.f32 %v77, %v78
      %v80 = vrot.slane %v79, 2
      %v81 = vadd.f32 %v79, %v80
      %v82 = vrot.slane %v81, 1
      %v83 = vadd.f32 %v81, %v82
      %s84 = vtos %v83
      %s85 = smul.f32 %s74, 2.0
      %s86 = sadd.f32 %s85, 1.0
      %s87 = sadd.f32 %s84, 1.0
      %v88 = vstv %s87
      %v89 = vrcp.pop %v88
      %s90 = vtos %v89
      %s91 = smul.f32 %s86, %s90
      %s92 = ssub.f32 1.0, %s91
      %s93 = scalar_lea.smem [#allocation9], 0
      %94 = sst [smem:[%s93]] %s92
    $region25: #{tpu_custom_call.1} parent=1 // pred_fallthru
      _
    // Predicated region
    $region26: #{tpu_custom_call.1} parent=1 // pred_check
      _
    $region27: #{tpu_custom_call.1} parent=1 // pred_check_branch
      %96 = sbr.rel (0) target = $region29
    $region28: #{tpu_custom_call.1} parent=1 // pred_region
      %s98 = ssub.s32 16, 16
      %99 = vsyncadd [#allocation6], %s98
      %102 = dma.smem_to_hbm [#allocation9], 16, %s2, [#allocation6]
    $region29: #{tpu_custom_call.1} parent=1 // pred_fallthru
      _
    // Predicated region
    $region30: #{tpu_custom_call.1} parent=1 // pred_check
      _
    $region31: #{tpu_custom_call.1} parent=1 // pred_check_branch
      %104 = sbr.rel (0) target = $region33
    $region32: #{tpu_custom_call.1} parent=1 // pred_region
      %105 = dma.done [#allocation6], 16
    $region33: #{tpu_custom_call.1} parent=1 // pred_fallthru
      _
    %106 = sfence
    %107 = vsyncpa [#allocation5], 1
    %108 = vsyncpa [#allocation8], 1
    %109 = vsyncpa [#allocation6], 1

</llo_original>
